<compile_context>
chip_gen: v6e
topology: v6e:2x2x1
jax: 0.10.0
libtpu: 0.0.40
codegen_flags: <defaults>
</compile_context>

<pallas_src>
import functools

import jax
import jax.numpy as jnp
from jax.experimental import pallas as pl
from jax.experimental.pallas import tpu as pltpu

HIDDEN = 128      # hidden width of layer1/layer2 and padded output width
N_OBS_PAD = 8     # observations padded up to a full sublane


def _round_up(x, m):
    return (x + m - 1) // m * m


def dqn_kernel(x_ref, w_ref, b_ref, o_ref):
    # x_ref: (TB, N_OBS_PAD)                bf16
    # w_ref: (N_OBS_PAD + 2*HIDDEN, HIDDEN) bf16   [w1 | w2 | w3] stacked on axis 0
    # b_ref: (3, HIDDEN)                    f32    rows = b1, b2, b3
    # o_ref: (TB, HIDDEN)                   f32    lane-dense padded output
    x = x_ref[...]

    # Static, sublane-aligned slices of the packed weight slab (zero-copy views).
    w1 = w_ref[0:N_OBS_PAD, :]
    w2 = w_ref[N_OBS_PAD:N_OBS_PAD + HIDDEN, :]
    w3 = w_ref[N_OBS_PAD + HIDDEN:N_OBS_PAD + 2 * HIDDEN, :]

    b1 = b_ref[0:1, :]
    b2 = b_ref[1:2, :]
    b3 = b_ref[2:3, :]

    # layer1 + ReLU (bf16 operands, f32 MXU accumulation)
    h1 = jnp.dot(x, w1, preferred_element_type=jnp.float32) + b1
    h1 = jnp.maximum(h1, 0.0).astype(jnp.bfloat16)

    # layer2 + ReLU
    h2 = jnp.dot(h1, w2, preferred_element_type=jnp.float32) + b2
    h2 = jnp.maximum(h2, 0.0).astype(jnp.bfloat16)

    # layer3 (no activation); columns >= n_actions are exact zeros.
    out = jnp.dot(h2, w3, preferred_element_type=jnp.float32) + b3
    o_ref[...] = out.astype(o_ref.dtype)


def pack_params(params):
    """Pad & pack (in, out)-layout params into the kernel's two slabs."""
    w1, b1, w2, b2, w3, b3 = params
    n_obs = w1.shape[0]
    n_actions = w3.shape[1]

    w1p = jnp.zeros((N_OBS_PAD, HIDDEN), jnp.float32).at[:n_obs, :].set(w1)
    w3p = jnp.zeros((HIDDEN, HIDDEN), jnp.float32).at[:, :n_actions].set(w3)
    w_slab = jnp.concatenate([w1p, w2, w3p], axis=0).astype(jnp.bfloat16)

    b3p = jnp.zeros((HIDDEN,), jnp.float32).at[:n_actions].set(b3)
    b_slab = jnp.stack([b1, b2, b3p], axis=0).astype(jnp.float32)  # (3, 128)
    return w_slab, b_slab


@functools.partial(jax.jit, static_argnames=("tb_max",))
def dqn_forward(x, params, *, tb_max=512):
    w1, _, _, _, w3, _ = params
    n_obs = w1.shape[0]
    n_actions = w3.shape[1]
    batch = x.shape[0]

    w_slab, b_slab = pack_params(params)

    # Batch tiling: one grid step per TB rows; weights stay VMEM-resident
    # (constant index_map), so they're DMA'd once and reused across steps.
    tb = min(tb_max, _round_up(batch, 8))
    bp = _round_up(batch, tb)
    grid = (bp // tb,)

    # Pad batch & observation dims and cast to bf16 (MXU-native operand).
    xp = jnp.pad(x.astype(jnp.bfloat16),
                 ((0, bp - batch), (0, N_OBS_PAD - n_obs)))

    out = pl.pallas_call(
        dqn_kernel,
        out_shape=jax.ShapeDtypeStruct((bp, HIDDEN), jnp.float32),
        grid=grid,
        in_specs=[
            pl.BlockSpec((tb, N_OBS_PAD), lambda i: (i, 0)),
            pl.BlockSpec(w_slab.shape, lambda i: (0, 0)),
            pl.BlockSpec(b_slab.shape, lambda i: (0, 0)),
        ],
        out_specs=pl.BlockSpec((tb, HIDDEN), lambda i: (i, 0)),
        compiler_params=pltpu.CompilerParams(
            dimension_semantics=("parallel",)),
    )(xp, w_slab, b_slab)

    return out[:batch, :n_actions]


def init_dqn_params(key, n_observations, n_actions):
    """PyTorch-style init: U(-1/sqrt(fan_in), 1/sqrt(fan_in)) for W and b."""
    def linear(key, fan_in, fan_out):
        kw, kb = jax.random.split(key)
        bound = 1.0 / jnp.sqrt(jnp.float32(fan_in))
        # stored as (in, out) so the kernel does x @ W (== PyTorch x @ W.T)
        w = jax.random.uniform(kw, (fan_in, fan_out), jnp.float32, -bound, bound)
        b = jax.random.uniform(kb, (fan_out,), jnp.float32, -bound, bound)
        return w, b

    k1, k2, k3 = jax.random.split(key, 3)
    w1, b1 = linear(k1, n_observations, 128)
    w2, b2 = linear(k2, 128, 128)
    w3, b3 = linear(k3, 128, n_actions)
    return (w1, b1, w2, b2, w3, b3)


def dqn_reference(x, params):
    """Pure-JAX f32 reference for correctness check."""
    w1, b1, w2, b2, w3, b3 = params
    h = jnp.maximum(x @ w1 + b1, 0.0)
    h = jnp.maximum(h @ w2 + b2, 0.0)
    return h @ w3 + b3


if __name__ == "__main__":
    # Acrobot-v1: 6 observations, 3 actions.
    n_observations, n_actions = 6, 3
    batch = 8

    key = jax.random.PRNGKey(0)
    k_params, k_x = jax.random.split(key)

    params = init_dqn_params(k_params, n_observations, n_actions)
    x = jax.random.normal(k_x, (batch, n_observations), dtype=jnp.float32)

    out = dqn_forward(x, params)
    out = jax.block_until_ready(out)

    ref = dqn_reference(x, params)
    assert out.shape == (batch, n_actions), out.shape
    max_diff = jnp.max(jnp.abs(out - ref))
    # bf16 matmul operands with f32 accumulation -> small (~1%) deviation vs f32.
    assert jnp.allclose(out, ref, atol=5e-2, rtol=5e-2), (
        f"max abs diff {max_diff}"
    )

    print("KERNEL_OK")
</pallas_src>

<mosaic_0001>
module attributes {stable_mosaic.version = 11 : i64} {
  func.func @dqn_kernel(%arg0: i32, %arg1: memref<8x8xbf16, #tpu.memory_space<vmem>>, %arg2: memref<264x128xbf16, #tpu.memory_space<vmem>>, %arg3: memref<3x128xf32, #tpu.memory_space<vmem>>, %arg4: memref<8x128xf32, #tpu.memory_space<vmem>>) attributes {dimension_semantics = [#tpu.dimension_semantics<parallel>], iteration_bounds = array<i64: 1>, scalar_prefetch = 0 : i64, scratch_operands = 0 : i64, tpu.core_type = #tpu.core_type<tc>, window_params = [{transform_indices = @transform_0, window_bounds = array<i64: 8, 8>}, {pipeline_mode = #tpu.pipeline_mode<synchronous>, transform_indices = @transform_1, window_bounds = array<i64: 264, 128>}, {pipeline_mode = #tpu.pipeline_mode<synchronous>, transform_indices = @transform_2, window_bounds = array<i64: 3, 128>}, {transform_indices = @transform_3, window_bounds = array<i64: 8, 128>}]} {
    %c0 = arith.constant 0 : index
    %c0_0 = arith.constant 0 : index
    %0 = vector.load %arg1[%c0, %c0_0] : memref<8x8xbf16, #tpu.memory_space<vmem>>, vector<8x8xbf16>
    %c0_1 = arith.constant 0 : index
    %c0_2 = arith.constant 0 : index
    %1 = vector.load %arg2[%c0_1, %c0_2] : memref<264x128xbf16, #tpu.memory_space<vmem>>, vector<8x128xbf16>
    %c8 = arith.constant 8 : index
    %c0_3 = arith.constant 0 : index
    %2 = vector.load %arg2[%c8, %c0_3] : memref<264x128xbf16, #tpu.memory_space<vmem>>, vector<128x128xbf16>
    %c136 = arith.constant 136 : index
    %c0_4 = arith.constant 0 : index
    %3 = vector.load %arg2[%c136, %c0_4] : memref<264x128xbf16, #tpu.memory_space<vmem>>, vector<128x128xbf16>
    %c0_5 = arith.constant 0 : index
    %c0_6 = arith.constant 0 : index
    %4 = vector.load %arg3[%c0_5, %c0_6] : memref<3x128xf32, #tpu.memory_space<vmem>>, vector<1x128xf32>
    %c1 = arith.constant 1 : index
    %c0_7 = arith.constant 0 : index
    %5 = vector.load %arg3[%c1, %c0_7] : memref<3x128xf32, #tpu.memory_space<vmem>>, vector<1x128xf32>
    %c2 = arith.constant 2 : index
    %c0_8 = arith.constant 0 : index
    %6 = vector.load %arg3[%c2, %c0_8] : memref<3x128xf32, #tpu.memory_space<vmem>>, vector<1x128xf32>
    %cst = arith.constant dense<0.000000e+00> : vector<8x128xf32>
    %7 = tpu.matmul %0, %1, %cst {dimension_numbers = #tpu.dot_dimension_numbers<[1], [0], [0], [1], [0, 0, 1, 1], [], []>} : vector<8x8xbf16>, vector<8x128xbf16>, vector<8x128xf32> -> vector<8x128xf32>
    %8 = vector.broadcast %4 : vector<1x128xf32> to vector<8x128xf32>
    %9 = arith.addf %7, %8 : vector<8x128xf32>
    %cst_9 = arith.constant 0.000000e+00 : f32
    %10 = vector.broadcast %cst_9 : f32 to vector<8x128xf32>
    %11 = arith.maximumf %9, %10 : vector<8x128xf32>
    %12 = arith.truncf %11 : vector<8x128xf32> to vector<8x128xbf16>
    %cst_10 = arith.constant dense<0.000000e+00> : vector<8x128xf32>
    %13 = tpu.matmul %12, %2, %cst_10 {dimension_numbers = #tpu.dot_dimension_numbers<[1], [0], [0], [1], [0, 0, 1, 1], [], []>} : vector<8x128xbf16>, vector<128x128xbf16>, vector<8x128xf32> -> vector<8x128xf32>
    %14 = vector.broadcast %5 : vector<1x128xf32> to vector<8x128xf32>
    %15 = arith.addf %13, %14 : vector<8x128xf32>
    %cst_11 = arith.constant 0.000000e+00 : f32
    %16 = vector.broadcast %cst_11 : f32 to vector<8x128xf32>
    %17 = arith.maximumf %15, %16 : vector<8x128xf32>
    %18 = arith.truncf %17 : vector<8x128xf32> to vector<8x128xbf16>
    %cst_12 = arith.constant dense<0.000000e+00> : vector<8x128xf32>
    %19 = tpu.matmul %18, %3, %cst_12 {dimension_numbers = #tpu.dot_dimension_numbers<[1], [0], [0], [1], [0, 0, 1, 1], [], []>} : vector<8x128xbf16>, vector<128x128xbf16>, vector<8x128xf32> -> vector<8x128xf32>
    %20 = vector.broadcast %6 : vector<1x128xf32> to vector<8x128xf32>
    %21 = arith.addf %19, %20 : vector<8x128xf32>
    %c0_13 = arith.constant 0 : index
    %c0_14 = arith.constant 0 : index
    %22 = vector.load %arg4[%c0_13, %c0_14] : memref<8x128xf32, #tpu.memory_space<vmem>>, vector<8x128xf32>
    tpu.vector_store %arg4[%c0_13, %c0_14], %21 {strides = array<i32>} : memref<8x128xf32, #tpu.memory_space<vmem>>, vector<8x128xf32>,
    return
  }
  func.func @transform_0(%arg0: i32) -> (i32, i32) {
    %c0_i32 = arith.constant 0 : i32
    %c0_i32_0 = arith.constant 0 : i32
    return %arg0, %c0_i32 : i32, i32
  }
  func.func @transform_1(%arg0: i32) -> (i32, i32) {
    %c0_i32 = arith.constant 0 : i32
    %c0_i32_0 = arith.constant 0 : i32
    %c0_i32_1 = arith.constant 0 : i32
    return %c0_i32, %c0_i32_0 : i32, i32
  }
  func.func @transform_2(%arg0: i32) -> (i32, i32) {
    %c0_i32 = arith.constant 0 : i32
    %c0_i32_0 = arith.constant 0 : i32
    %c0_i32_1 = arith.constant 0 : i32
    return %c0_i32, %c0_i32_0 : i32, i32
  }
  func.func @transform_3(%arg0: i32) -> (i32, i32) {
    %c0_i32 = arith.constant 0 : i32
    %c0_i32_0 = arith.constant 0 : i32
    return %arg0, %c0_i32 : i32, i32
  }
}

</mosaic_0001>

<llo_original>
// kernel: dqn_forward.1
$region0: #{dqn_forward.1}
  #allocation0 [shape = 'u32[]', space=smem, size = 0x4, offset = 0x4, fixed_abs, tag = 'smem constant byte address 0x4 - core index']
  #allocation1 [shape = 'u32[144,128]{1,0:T(1,128)}', space=vmem, size = 0x12000, scoped, tag = 'internal scratch']
  %s0 = inlined_call_operand.vmem [shape: bf16[8,8], index: 0, kind: input, shape index: {}]
  %s1 = inlined_call_operand.vmem [shape: bf16[264,128], index: 1, kind: input, shape index: {}]
  %s2 = inlined_call_operand.vmem [shape: f32[3,128], index: 2, kind: input, shape index: {}]
  %s3 = inlined_call_operand.vmem [shape: f32[8,128], index: 3, kind: output, shape index: {}]
  %s4 = sld [smem:[#allocation0]]
  $region22: #{dqn_forward.1} parent=0
    _
  %s6 = ssub.s32 1, %s4
  %s7 = scalar_select 0, %s6, %s4
  // Predicated region
  $region2: #{dqn_forward.1} parent=0 // pred_check
    _
  $region3: #{dqn_forward.1} parent=0 // pred_check_branch
    %9 = sbr.rel (0) target = $region5
  $region4: #{dqn_forward.1} parent=0 // pred_region
    _
  $region5: #{dqn_forward.1} parent=0 // pred_fallthru
    _
  // Predicated region
  $region6: #{dqn_forward.1} parent=0 // pred_check
    _
  $region7: #{dqn_forward.1} parent=0 // pred_check_branch
    %11 = sbr.rel (0) target = $region9
  $region8: #{dqn_forward.1} parent=0 // pred_region
    _
  $region9: #{dqn_forward.1} parent=0 // pred_fallthru
    _
  // Predicated region
  $region10: #{dqn_forward.1} parent=0 // pred_check
    _
  $region11: #{dqn_forward.1} parent=0 // pred_check_branch
    %13 = sbr.rel (0) target = $region13
  $region12: #{dqn_forward.1} parent=0 // pred_region
    _
  $region13: #{dqn_forward.1} parent=0 // pred_fallthru
    _
  %v15 = vld [vmem:[%s0] sm:$0xf]
  %v16 = vld [vmem:[%s1] sm:$0xf]
  %v17 = vld [vmem:[%s1 + $0x4] sm:$0xf]
  %v18 = vld [vmem:[%s1 + $0x8] sm:$0xf]
  %v19 = vld [vmem:[%s1 + $0xc] sm:$0xf]
  %v20 = vld [vmem:[%s1 + $0x10] sm:$0xf]
  %v21 = vld [vmem:[%s1 + $0x14] sm:$0xf]
  %v22 = vld [vmem:[%s1 + $0x18] sm:$0xf]
  %v23 = vld [vmem:[%s1 + $0x1c] sm:$0xf]
  %v24 = vld [vmem:[%s1 + $0x20] sm:$0xf]
  %v25 = vld [vmem:[%s1 + $0x24] sm:$0xf]
  %v26 = vld [vmem:[%s1 + $0x28] sm:$0xf]
  %v27 = vld [vmem:[%s1 + $0x2c] sm:$0xf]
  %v28 = vld [vmem:[%s1 + $0x30] sm:$0xf]
  %v29 = vld [vmem:[%s1 + $0x34] sm:$0xf]
  %v30 = vld [vmem:[%s1 + $0x38] sm:$0xf]
  %v31 = vld [vmem:[%s1 + $0x3c] sm:$0xf]
  %v32 = vld [vmem:[%s1 + $0x40] sm:$0xf]
  %v33 = vld [vmem:[%s1 + $0x44] sm:$0xf]
  %v34 = vld [vmem:[%s1 + $0x48] sm:$0xf]
  %v35 = vld [vmem:[%s1 + $0x4c] sm:$0xf]
  %v36 = vld [vmem:[%s1 + $0x50] sm:$0xf]
  %v37 = vld [vmem:[%s1 + $0x54] sm:$0xf]
  %v38 = vld [vmem:[%s1 + $0x58] sm:$0xf]
  %v39 = vld [vmem:[%s1 + $0x5c] sm:$0xf]
  %v40 = vld [vmem:[%s1 + $0x60] sm:$0xf]
  %v41 = vld [vmem:[%s1 + $0x64] sm:$0xf]
  %v42 = vld [vmem:[%s1 + $0x68] sm:$0xf]
  %v43 = vld [vmem:[%s1 + $0x6c] sm:$0xf]
  %v44 = vld [vmem:[%s1 + $0x70] sm:$0xf]
  %v45 = vld [vmem:[%s1 + $0x74] sm:$0xf]
  %v46 = vld [vmem:[%s1 + $0x78] sm:$0xf]
  %v47 = vld [vmem:[%s1 + $0x7c] sm:$0xf]
  %v48 = vld [vmem:[%s1 + $0x80] sm:$0xf]
  %v49 = vld [vmem:[%s2] sm:$0x1]
  %v50 = vld [vmem:[%s2 + $0x1] sm:$0x1]
  %v51 = vld [vmem:[%s2 + $0x2] sm:$0x1]
  %v52 = vlaneseq
  %v53 = vshrl.u32 %v52, 7
  %v54 = vsub.s32 0, %v53
  %v55 = vrot.slane %v49, %v54
  %vm56 = vcmask 64512
  %v58 = vsel %vm56, %v15, 0
  %vm60 = vcmask 1043456
  %v62 = vsel %vm60, %v16, 0
  %64 = vmatprep.subr.bf16.mxu0 0
  %65 = vmatpush1.bf16.msra.mxu0 0
  %66 = vmatprep.subr.bf16.mxu0 0
  %67 = vmatpush1.bf16.msra.mxu0 0
  %68 = vmatprep.subr.bf16.mxu0 0
  %69 = vmatpush1.bf16.msra.mxu0 0
  %70 = vmatprep.subr.bf16.mxu0 0
  %71 = vmatpush1.bf16.msra.mxu0 0
  %72 = vmatprep.subr.bf16.mxu0 0
  %73 = vmatpush1.bf16.msra.mxu0 0
  %74 = vmatprep.subr.bf16.mxu0 0
  %75 = vmatpush1.bf16.msra.mxu0 0
  %76 = vmatprep.subr.bf16.mxu0 0
  %77 = vmatpush1.bf16.msra.mxu0 0
  %78 = vmatprep.subr.bf16.mxu0 0
  %79 = vmatpush1.bf16.msra.mxu0 %v62
  %80 = vmatprep.subr.bf16.mxu0 0
  %81 = vmatpush2.bf16.msra.mxu0 0
  %82 = vmatprep.subr.bf16.mxu0 0
  %83 = vmatpush2.bf16.msra.mxu0 0
  %84 = vmatprep.subr.bf16.mxu0 0
  %85 = vmatpush2.bf16.msra.mxu0 0
  %86 = vmatprep.subr.bf16.mxu0 0
  %87 = vmatpush2.bf16.msra.mxu0 0
  %88 = vmatprep.subr.bf16.mxu0 0
  %89 = vmatpush2.bf16.msra.mxu0 0
  %90 = vmatprep.subr.bf16.mxu0 0
  %91 = vmatpush2.bf16.msra.mxu0 0
  %92 = vmatprep.subr.bf16.mxu0 0
  %93 = vmatpush2.bf16.msra.mxu0 0
  %94 = vmatprep.subr.bf16.mxu0 0
  %95 = vmatpush2.bf16.msra.mxu0 0
  %96 = vmatprep.mubr.bf16.mxu0 0
  %97 = vmatmul.mubr.bf16.gmra.mxu0 %v58
  %v98 = vpop.f32.mrf.mxu0
  %v99 = vadd.f32 %v55, %v98
  %v100 = vpop.f32.mrf.mxu0
  %v101 = vpop.f32.mrf.mxu0
  %v102 = vpop.f32.mrf.mxu0
  %103 = vdwg.mxu0
  %v104 = vmax.f32 %v99, 0.0
  %v105 = vpack.c.bf16 %v104, %v104
  %v106 = vlaneseq
  %v107 = vshrl.u32 %v106, 7
  %v108 = vsub.s32 0, %v107
  %v109 = vrot.slane %v50, %v108
  %v126 = vunpack.c.l.b16 %v17
  %v127 = vunpack.c.l.b16 %v18
  %v128 = vunpack.c.l.b16 %v19
  %v129 = vunpack.c.l.b16 %v20
  %v130 = vunpack.c.l.b16 %v21
  %v131 = vunpack.c.l.b16 %v22
  %v132 = vunpack.c.l.b16 %v23
  %v133 = vunpack.c.l.b16 %v24
  %v134 = vunpack.c.l.b16 %v25
  %v135 = vunpack.c.l.b16 %v26
  %v136 = vunpack.c.l.b16 %v27
  %v137 = vunpack.c.l.b16 %v28
  %v138 = vunpack.c.l.b16 %v29
  %v139 = vunpack.c.l.b16 %v30
  %v140 = vunpack.c.l.b16 %v31
  %v141 = vunpack.c.l.b16 %v32
  %v142 = vpack.c.b16 %v127, %v126
  %v143 = vpack.c.b16 %v129, %v128
  %v144 = vpack.c.b16 %v131, %v130
  %v145 = vpack.c.b16 %v133, %v132
  %v146 = vpack.c.b16 %v135, %v134
  %v147 = vpack.c.b16 %v137, %v136
  %v148 = vpack.c.b16 %v139, %v138
  %v149 = vpack.c.b16 %v141, %v140
  %158 = vmatprep.subr.bf16.mxu0 0
  %159 = vmatpush1.bf16.msra.mxu0 %v149
  %160 = vmatprep.subr.bf16.mxu0 0
  %161 = vmatpush1.bf16.msra.mxu0 %v148
  %162 = vmatprep.subr.bf16.mxu0 0
  %163 = vmatpush1.bf16.msra.mxu0 %v147
  %164 = vmatprep.subr.bf16.mxu0 0
  %165 = vmatpush1.bf16.msra.mxu0 %v146
  %166 = vmatprep.subr.bf16.mxu0 0
  %167 = vmatpush1.bf16.msra.mxu0 %v145
  %168 = vmatprep.subr.bf16.mxu0 0
  %169 = vmatpush1.bf16.msra.mxu0 %v144
  %170 = vmatprep.subr.bf16.mxu0 0
  %171 = vmatpush1.bf16.msra.mxu0 %v143
  %172 = vmatprep.subr.bf16.mxu0 0
  %173 = vmatpush1.bf16.msra.mxu0 %v142
  %174 = vmatprep.subr.bf16.mxu0 0
  %175 = vmatpush2.bf16.msra.mxu0 0
  %176 = vmatprep.subr.bf16.mxu0 0
  %177 = vmatpush2.bf16.msra.mxu0 0
  %178 = vmatprep.subr.bf16.mxu0 0
  %179 = vmatpush2.bf16.msra.mxu0 0
  %180 = vmatprep.subr.bf16.mxu0 0
  %181 = vmatpush2.bf16.msra.mxu0 0
  %182 = vmatprep.subr.bf16.mxu0 0
  %183 = vmatpush2.bf16.msra.mxu0 0
  %184 = vmatprep.subr.bf16.mxu0 0
  %185 = vmatpush2.bf16.msra.mxu0 0
  %186 = vmatprep.subr.bf16.mxu0 0
  %187 = vmatpush2.bf16.msra.mxu0 0
  %188 = vmatprep.subr.bf16.mxu0 0
  %189 = vmatpush2.bf16.msra.mxu0 0
  %190 = vmatprep.mubr.bf16.mxu0 0
  %191 = vmatmul.mubr.bf16.gmra.mxu0 %v105
  %v192 = vpop.f32.mrf.mxu0
  %v193 = vadd.f32 %v109, %v192
  %v194 = vpop.f32.mrf.mxu0
  %v195 = vpop.f32.mrf.mxu0
  %v196 = vpop.f32.mrf.mxu0
  %197 = vdwg.mxu0
  %v198 = vmax.f32 %v193, 0.0
  %v199 = vpack.c.bf16 %v198, %v198
  %v200 = vlaneseq
  %v201 = vshrl.u32 %v200, 7
  %v202 = vsub.s32 0, %v201
  %v203 = vrot.slane %v51, %v202
  %v220 = vunpack.c.l.b16 %v33
  %v221 = vunpack.c.l.b16 %v34
  %v222 = vunpack.c.l.b16 %v35
  %v223 = vunpack.c.l.b16 %v36
  %v224 = vunpack.c.l.b16 %v37
  %v225 = vunpack.c.l.b16 %v38
  %v226 = vunpack.c.l.b16 %v39
  %v227 = vunpack.c.l.b16 %v40
  %v228 = vunpack.c.l.b16 %v41
  %v229 = vunpack.c.l.b16 %v42
  %v230 = vunpack.c.l.b16 %v43
  %v231 = vunpack.c.l.b16 %v44
  %v232 = vunpack.c.l.b16 %v45
  %v233 = vunpack.c.l.b16 %v46
  %v234 = vunpack.c.l.b16 %v47
  %v235 = vunpack.c.l.b16 %v48
  %v236 = vpack.c.b16 %v221, %v220
  %v237 = vpack.c.b16 %v223, %v222
  %v238 = vpack.c.b16 %v225, %v224
  %v239 = vpack.c.b16 %v227, %v226
  %v240 = vpack.c.b16 %v229, %v228
  %v241 = vpack.c.b16 %v231, %v230
  %v242 = vpack.c.b16 %v233, %v232
  %v243 = vpack.c.b16 %v235, %v234
  %252 = vmatprep.subr.bf16.mxu0 0
  %253 = vmatpush1.bf16.msra.mxu0 %v243
  %254 = vmatprep.subr.bf16.mxu0 0
  %255 = vmatpush1.bf16.msra.mxu0 %v242
  %256 = vmatprep.subr.bf16.mxu0 0
  %257 = vmatpush1.bf16.msra.mxu0 %v241
  %258 = vmatprep.subr.bf16.mxu0 0
  %259 = vmatpush1.bf16.msra.mxu0 %v240
  %260 = vmatprep.subr.bf16.mxu0 0
  %261 = vmatpush1.bf16.msra.mxu0 %v239
  %262 = vmatprep.subr.bf16.mxu0 0
  %263 = vmatpush1.bf16.msra.mxu0 %v238
  %264 = vmatprep.subr.bf16.mxu0 0
  %265 = vmatpush1.bf16.msra.mxu0 %v237
  %266 = vmatprep.subr.bf16.mxu0 0
  %267 = vmatpush1.bf16.msra.mxu0 %v236
  %268 = vmatprep.subr.bf16.mxu0 0
  %269 = vmatpush2.bf16.msra.mxu0 0
  %270 = vmatprep.subr.bf16.mxu0 0
  %271 = vmatpush2.bf16.msra.mxu0 0
  %272 = vmatprep.subr.bf16.mxu0 0
  %273 = vmatpush2.bf16.msra.mxu0 0
  %274 = vmatprep.subr.bf16.mxu0 0
  %275 = vmatpush2.bf16.msra.mxu0 0
  %276 = vmatprep.subr.bf16.mxu0 0
  %277 = vmatpush2.bf16.msra.mxu0 0
  %278 = vmatprep.subr.bf16.mxu0 0
  %279 = vmatpush2.bf16.msra.mxu0 0
  %280 = vmatprep.subr.bf16.mxu0 0
  %281 = vmatpush2.bf16.msra.mxu0 0
  %282 = vmatprep.subr.bf16.mxu0 0
  %283 = vmatpush2.bf16.msra.mxu0 0
  %284 = vmatprep.mubr.bf16.mxu0 0
  %285 = vmatmul.mubr.bf16.gmra.mxu0 %v199
  %v286 = vpop.f32.mrf.mxu0
  %v287 = vadd.f32 %v203, %v286
  %v288 = vpop.f32.mrf.mxu0
  %v289 = vpop.f32.mrf.mxu0
  %v290 = vpop.f32.mrf.mxu0
  %291 = vdwg.mxu0
  %292 = vst [vmem:[%s3] sm:$0xff] %v287
  // Predicated region
  $region14: #{dqn_forward.1} parent=0 // pred_check
    _
  $region15: #{dqn_forward.1} parent=0 // pred_check_branch
    %294 = sbr.rel (0) target = $region17
  $region16: #{dqn_forward.1} parent=0 // pred_region
    _
  $region17: #{dqn_forward.1} parent=0 // pred_fallthru
    _
  // Predicated region
  $region18: #{dqn_forward.1} parent=0 // pred_check
    _
  $region19: #{dqn_forward.1} parent=0 // pred_check_branch
    %296 = sbr.rel (0) target = $region21
  $region20: #{dqn_forward.1} parent=0 // pred_region
    _
  $region21: #{dqn_forward.1} parent=0 // pred_fallthru
    _

</llo_original>
